<compile_context>
chip_gen: v6e
topology: v6e:2x2x1
jax: 0.10.0
libtpu: 0.0.40
codegen_flags: <defaults>
</compile_context>

<pallas_src>
import jax
import jax.numpy as jnp
from jax.experimental import pallas as pl
from jax.experimental.pallas import tpu as pltpu


def _round_up(x, m):
    return ((x + m - 1) // m) * m


# ----------------------------- Pallas kernel ------------------------------ #
def gcn_kernel(a_ref, x_ref, w1_ref, b1_ref, w2_ref, b2_ref, o_ref):
    """One graph per grid step:  out = A @ relu((A @ X) @ W1 + b1) @ W2 + b2."""
    a = a_ref[0]                                           # (N, N)   f32
    x = x_ref[0]                                           # (N, IN)  f32

    # layer 1 (reassociated, IN < HID):  h = relu((A @ X) @ W1 + b1)
    ax = jnp.dot(a, x, preferred_element_type=jnp.float32)
    h = jnp.dot(ax, w1_ref[...], preferred_element_type=jnp.float32)
    h = jnp.maximum(h + b1_ref[...], 0.0)                  # fused bias + ReLU (VPU)

    # layer 2 (OUT < HID):  out = A @ (H @ W2) + b2
    hw = jnp.dot(h, w2_ref[...], preferred_element_type=jnp.float32)
    o_ref[0] = jnp.dot(a, hw, preferred_element_type=jnp.float32) + b2_ref[...]


@jax.jit
def gcn_forward(a_hat, x, w1, b1, w2, b2):
    """a_hat: (N,N) or (B,N,N); x: (N,IN) or (B,N,IN). Returns (…, N, OUT)."""
    squeeze = a_hat.ndim == 2
    if squeeze:
        a_hat, x = a_hat[None], x[None]
    B, n, _ = a_hat.shape
    in_dim, hid_dim = w1.shape
    out_dim = w2.shape[1]

    # f32 layout: node dim -> multiple of 8 (sublane); small feature dims -> 8;
    # OUTPUT feature dim -> 128 so the store is lane-dense (unmasked vst).
    n_p = _round_up(n, 8)
    in_p = _round_up(in_dim, 8)
    hid_p = _round_up(hid_dim, 8)
    out_p = _round_up(out_dim, 128)

    f32 = jnp.float32
    # NOTE: at large N, fuse this pad into gcn_norm_dense (build A_hat already
    # padded) to avoid an extra full-N^2 HBM pass; a no-op at this size.
    a_p = jnp.pad(a_hat.astype(f32), ((0, 0), (0, n_p - n), (0, n_p - n)))
    x_p = jnp.pad(x.astype(f32), ((0, 0), (0, n_p - n), (0, in_p - in_dim)))
    w1_p = jnp.pad(w1.astype(f32), ((0, in_p - in_dim), (0, hid_p - hid_dim)))
    w2_p = jnp.pad(w2.astype(f32), ((0, hid_p - hid_dim), (0, out_p - out_dim)))
    b1_p = jnp.pad(b1.astype(f32), (0, hid_p - hid_dim))[None, :]
    b2_p = jnp.pad(b2.astype(f32), (0, out_p - out_dim))[None, :]

    flops = 2 * B * (n_p * n_p * in_p + n_p * in_p * hid_p
                     + n_p * hid_p * out_p + n_p * n_p * out_p)
    bytes_accessed = 4 * (a_p.size + x_p.size + w1_p.size + w2_p.size
                          + b1_p.size + b2_p.size + B * n_p * out_p)

    out_full = pl.pallas_call(
        gcn_kernel,
        out_shape=jax.ShapeDtypeStruct((B, n_p, out_p), f32),
        grid_spec=pltpu.PrefetchScalarGridSpec(
            num_scalar_prefetch=0,
            grid=(B,),
            in_specs=[
                pl.BlockSpec((1, n_p, n_p), lambda b: (b, 0, 0)),   # A_hat[b]
                pl.BlockSpec((1, n_p, in_p), lambda b: (b, 0, 0)),  # X[b]
                pl.BlockSpec((in_p, hid_p), lambda b: (0, 0)),      # W1 (resident)
                pl.BlockSpec((1, hid_p), lambda b: (0, 0)),         # b1 (resident)
                pl.BlockSpec((hid_p, out_p), lambda b: (0, 0)),     # W2 (resident)
                pl.BlockSpec((1, out_p), lambda b: (0, 0)),         # b2 (resident)
            ],
            out_specs=pl.BlockSpec((1, n_p, out_p), lambda b: (b, 0, 0)),
        ),
        compiler_params=pltpu.CompilerParams(
            dimension_semantics=("parallel",)),    # megacore sharding on v7x
        cost_estimate=pl.CostEstimate(flops=flops, transcendentals=0,
                                      bytes_accessed=bytes_accessed),
    )(a_p, x_p, w1_p, b1_p, w2_p, b2_p)

    # Padded phantom rows carry +b2 only; they are dropped here.
    out = out_full[:, :n, :out_dim]
    return out[0] if squeeze else out


# ------------------------------- graph glue -------------------------------- #
def build_knn_graph(x, k=5):
    """kneighbors_graph(mode='connectivity', include_self=True).nonzero() equiv."""
    n = x.shape[0]
    d2 = jnp.sum((x[:, None, :] - x[None, :, :]) ** 2, axis=-1)
    nbrs = jnp.argsort(d2, axis=-1)[:, :k]               # self (dist 0) included
    row = jnp.repeat(jnp.arange(n), k)                   # query node i
    col = nbrs.reshape(-1)                               # neighbor j
    return jnp.stack([row, col]).astype(jnp.int32)


def gcn_norm_dense(edge_index, num_nodes):
    """Dense A_hat = D^-1/2 (A + remaining self loops) D^-1/2  (PyG gcn_norm)."""
    src, dst = edge_index
    a = jnp.zeros((num_nodes, num_nodes), jnp.float32).at[dst, src].add(1.0)
    diag = jnp.diag(a)
    a = a + jnp.diag(jnp.where(diag > 0.0, 0.0, 1.0))    # add *remaining* self loops
    deg = a.sum(axis=1)
    dinv = jnp.where(deg > 0.0, 1.0 / jnp.sqrt(deg), 0.0)
    return dinv[:, None] * a * dinv[None, :]


def glorot(key, fan_in, fan_out):
    lim = jnp.sqrt(6.0 / (fan_in + fan_out))
    return jax.random.uniform(key, (fan_in, fan_out), jnp.float32, -lim, lim)


def gcn_ref(a_hat, x, w1, b1, w2, b2):
    return a_hat @ jnp.maximum(a_hat @ (x @ w1) + b1, 0.0) @ w2 + b2


# --------------------------------- main ------------------------------------ #
if __name__ == "__main__":
    N, IN_DIM, HID_DIM, OUT_DIM, K = 16, 3, 32, 4, 5

    key = jax.random.PRNGKey(0)
    kx, kx2, kw1, kb1, kw2, kb2 = jax.random.split(key, 6)

    # standardized synthetic node features (wind speed / power / rotor speed)
    x = jax.random.normal(kx, (N, IN_DIM), jnp.float32)
    edge_index = build_knn_graph(x, k=K)
    a_hat = gcn_norm_dense(edge_index, N)

    # deterministic GCNConv parameters (glorot weights, small uniform biases)
    w1 = glorot(kw1, IN_DIM, HID_DIM)
    b1 = jax.random.uniform(kb1, (HID_DIM,), jnp.float32, -0.1, 0.1)
    w2 = glorot(kw2, HID_DIM, OUT_DIM)
    b2 = jax.random.uniform(kb2, (OUT_DIM,), jnp.float32, -0.1, 0.1)

    # ---- single-graph forward (matches the PyTorch module) ----
    out = jax.block_until_ready(gcn_forward(a_hat, x, w1, b1, w2, b2))
    assert out.shape == (N, OUT_DIM)
    ref = gcn_ref(a_hat, x, w1, b1, w2, b2)
    err = float(jnp.max(jnp.abs(out - ref)))
    assert jnp.allclose(out, ref, atol=2e-2, rtol=2e-2), err

    # ---- batched forward (2 graphs) exercising the parallel grid axis ----
    x2 = jax.random.normal(kx2, (N, IN_DIM), jnp.float32)
    a_hat2 = gcn_norm_dense(build_knn_graph(x2, k=K), N)
    a_b = jnp.stack([a_hat, a_hat2])
    x_b = jnp.stack([x, x2])
    out_b = jax.block_until_ready(gcn_forward(a_b, x_b, w1, b1, w2, b2))
    assert out_b.shape == (2, N, OUT_DIM)
    ref_b = jnp.stack([ref, gcn_ref(a_hat2, x2, w1, b1, w2, b2)])
    assert jnp.allclose(out_b, ref_b, atol=2e-2, rtol=2e-2)

    print("KERNEL_OK")
</pallas_src>

<mosaic_0001>
module attributes {stable_mosaic.version = 11 : i64} {
  func.func @gcn_kernel(%arg0: i32, %arg1: memref<1x16x16xf32, #tpu.memory_space<vmem>>, %arg2: memref<1x16x8xf32, #tpu.memory_space<vmem>>, %arg3: memref<8x32xf32, #tpu.memory_space<vmem>>, %arg4: memref<1x32xf32, #tpu.memory_space<vmem>>, %arg5: memref<32x128xf32, #tpu.memory_space<vmem>>, %arg6: memref<1x128xf32, #tpu.memory_space<vmem>>, %arg7: memref<1x16x128xf32, #tpu.memory_space<vmem>>) attributes {dimension_semantics = [#tpu.dimension_semantics<parallel>], iteration_bounds = array<i64: 1>, scalar_prefetch = 0 : i64, scratch_operands = 0 : i64, tpu.core_type = #tpu.core_type<tc>, window_params = [{transform_indices = @transform_0, window_bounds = array<i64: 1, 16, 16>}, {transform_indices = @transform_1, window_bounds = array<i64: 1, 16, 8>}, {pipeline_mode = #tpu.pipeline_mode<synchronous>, transform_indices = @transform_2, window_bounds = array<i64: 8, 32>}, {pipeline_mode = #tpu.pipeline_mode<synchronous>, transform_indices = @transform_3, window_bounds = array<i64: 1, 32>}, {pipeline_mode = #tpu.pipeline_mode<synchronous>, transform_indices = @transform_4, window_bounds = array<i64: 32, 128>}, {pipeline_mode = #tpu.pipeline_mode<synchronous>, transform_indices = @transform_5, window_bounds = array<i64: 1, 128>}, {transform_indices = @transform_6, window_bounds = array<i64: 1, 16, 128>}]} {
    %c0 = arith.constant 0 : index
    %c0_0 = arith.constant 0 : index
    %c0_1 = arith.constant 0 : index
    %0 = vector.load %arg1[%c0, %c0_0, %c0_1] : memref<1x16x16xf32, #tpu.memory_space<vmem>>, vector<1x16x16xf32>
    %1 = vector.shape_cast %0 : vector<1x16x16xf32> to vector<16x16xf32>
    %c0_2 = arith.constant 0 : index
    %c0_3 = arith.constant 0 : index
    %c0_4 = arith.constant 0 : index
    %2 = vector.load %arg2[%c0_2, %c0_3, %c0_4] : memref<1x16x8xf32, #tpu.memory_space<vmem>>, vector<1x16x8xf32>
    %3 = vector.shape_cast %2 : vector<1x16x8xf32> to vector<16x8xf32>
    %cst = arith.constant dense<0.000000e+00> : vector<16x8xf32>
    %4 = tpu.matmul %1, %3, %cst {dimension_numbers = #tpu.dot_dimension_numbers<[1], [0], [0], [1], [0, 0, 1, 1], [], []>} : vector<16x16xf32>, vector<16x8xf32>, vector<16x8xf32> -> vector<16x8xf32>
    %c0_5 = arith.constant 0 : index
    %c0_6 = arith.constant 0 : index
    %5 = vector.load %arg3[%c0_5, %c0_6] : memref<8x32xf32, #tpu.memory_space<vmem>>, vector<8x32xf32>
    %cst_7 = arith.constant dense<0.000000e+00> : vector<16x32xf32>
    %6 = tpu.matmul %4, %5, %cst_7 {dimension_numbers = #tpu.dot_dimension_numbers<[1], [0], [0], [1], [0, 0, 1, 1], [], []>} : vector<16x8xf32>, vector<8x32xf32>, vector<16x32xf32> -> vector<16x32xf32>
    %c0_8 = arith.constant 0 : index
    %c0_9 = arith.constant 0 : index
    %7 = vector.load %arg4[%c0_8, %c0_9] : memref<1x32xf32, #tpu.memory_space<vmem>>, vector<1x32xf32>
    %8 = vector.broadcast %7 : vector<1x32xf32> to vector<16x32xf32>
    %9 = arith.addf %6, %8 : vector<16x32xf32>
    %cst_10 = arith.constant 0.000000e+00 : f32
    %10 = vector.broadcast %cst_10 : f32 to vector<16x32xf32>
    %11 = arith.maximumf %9, %10 : vector<16x32xf32>
    %c0_11 = arith.constant 0 : index
    %c0_12 = arith.constant 0 : index
    %12 = vector.load %arg5[%c0_11, %c0_12] : memref<32x128xf32, #tpu.memory_space<vmem>>, vector<32x128xf32>
    %cst_13 = arith.constant dense<0.000000e+00> : vector<16x128xf32>
    %13 = tpu.matmul %11, %12, %cst_13 {dimension_numbers = #tpu.dot_dimension_numbers<[1], [0], [0], [1], [0, 0, 1, 1], [], []>} : vector<16x32xf32>, vector<32x128xf32>, vector<16x128xf32> -> vector<16x128xf32>
    %cst_14 = arith.constant dense<0.000000e+00> : vector<16x128xf32>
    %14 = tpu.matmul %1, %13, %cst_14 {dimension_numbers = #tpu.dot_dimension_numbers<[1], [0], [0], [1], [0, 0, 1, 1], [], []>} : vector<16x16xf32>, vector<16x128xf32>, vector<16x128xf32> -> vector<16x128xf32>
    %c0_15 = arith.constant 0 : index
    %c0_16 = arith.constant 0 : index
    %15 = vector.load %arg6[%c0_15, %c0_16] : memref<1x128xf32, #tpu.memory_space<vmem>>, vector<1x128xf32>
    %16 = vector.broadcast %15 : vector<1x128xf32> to vector<16x128xf32>
    %17 = arith.addf %14, %16 : vector<16x128xf32>
    %c0_17 = arith.constant 0 : index
    %c0_18 = arith.constant 0 : index
    %c0_19 = arith.constant 0 : index
    %18 = vector.load %arg7[%c0_17, %c0_18, %c0_19] : memref<1x16x128xf32, #tpu.memory_space<vmem>>, vector<1x16x128xf32>
    %19 = vector.shape_cast %18 : vector<1x16x128xf32> to vector<16x128xf32>
    %20 = vector.shape_cast %17 : vector<16x128xf32> to vector<1x16x128xf32>
    tpu.vector_store %arg7[%c0_17, %c0_18, %c0_19], %20 {strides = array<i32>} : memref<1x16x128xf32, #tpu.memory_space<vmem>>, vector<1x16x128xf32>,
    return
  }
  func.func @transform_0(%arg0: i32) -> (i32, i32, i32) {
    %c0_i32 = arith.constant 0 : i32
    %c0_i32_0 = arith.constant 0 : i32
    %c0_i32_1 = arith.constant 0 : i32
    return %arg0, %c0_i32, %c0_i32_0 : i32, i32, i32
  }
  func.func @transform_1(%arg0: i32) -> (i32, i32, i32) {
    %c0_i32 = arith.constant 0 : i32
    %c0_i32_0 = arith.constant 0 : i32
    %c0_i32_1 = arith.constant 0 : i32
    return %arg0, %c0_i32, %c0_i32_0 : i32, i32, i32
  }
  func.func @transform_2(%arg0: i32) -> (i32, i32) {
    %c0_i32 = arith.constant 0 : i32
    %c0_i32_0 = arith.constant 0 : i32
    %c0_i32_1 = arith.constant 0 : i32
    return %c0_i32, %c0_i32_0 : i32, i32
  }
  func.func @transform_3(%arg0: i32) -> (i32, i32) {
    %c0_i32 = arith.constant 0 : i32
    %c0_i32_0 = arith.constant 0 : i32
    %c0_i32_1 = arith.constant 0 : i32
    return %c0_i32, %c0_i32_0 : i32, i32
  }
  func.func @transform_4(%arg0: i32) -> (i32, i32) {
    %c0_i32 = arith.constant 0 : i32
    %c0_i32_0 = arith.constant 0 : i32
    %c0_i32_1 = arith.constant 0 : i32
    return %c0_i32, %c0_i32_0 : i32, i32
  }
  func.func @transform_5(%arg0: i32) -> (i32, i32) {
    %c0_i32 = arith.constant 0 : i32
    %c0_i32_0 = arith.constant 0 : i32
    %c0_i32_1 = arith.constant 0 : i32
    return %c0_i32, %c0_i32_0 : i32, i32
  }
  func.func @transform_6(%arg0: i32) -> (i32, i32, i32) {
    %c0_i32 = arith.constant 0 : i32
    %c0_i32_0 = arith.constant 0 : i32
    %c0_i32_1 = arith.constant 0 : i32
    return %arg0, %c0_i32, %c0_i32_0 : i32, i32, i32
  }
}

</mosaic_0001>

<llo_original>
// kernel: gcn_forward.1
$region0: #{gcn_forward.1}
  #allocation0 [shape = 'u32[]', space=smem, size = 0x4, offset = 0x4, fixed_abs, tag = 'smem constant byte address 0x4 - core index']
  #allocation1 [shape = 'u32[144,128]{1,0:T(1,128)}', space=vmem, size = 0x12000, scoped, tag = 'internal scratch']
  %s0 = inlined_call_operand.vmem [shape: f32[1,16,16], index: 0, kind: input, shape index: {}]
  %s1 = inlined_call_operand.vmem [shape: f32[1,16,8], index: 1, kind: input, shape index: {}]
  %s2 = inlined_call_operand.vmem [shape: f32[8,32], index: 2, kind: input, shape index: {}]
  %s3 = inlined_call_operand.vmem [shape: f32[1,32], index: 3, kind: input, shape index: {}]
  %s4 = inlined_call_operand.vmem [shape: f32[32,128], index: 4, kind: input, shape index: {}]
  %s5 = inlined_call_operand.vmem [shape: f32[1,128], index: 5, kind: input, shape index: {}]
  %s6 = inlined_call_operand.vmem [shape: f32[1,16,128], index: 6, kind: output, shape index: {}]
  %s7 = sld [smem:[#allocation0]]
  $region34: #{gcn_forward.1} parent=0
    _
  %s9 = ssub.s32 1, %s7
  %s10 = scalar_select 0, %s9, %s7
  // Predicated region
  $region2: #{gcn_forward.1} parent=0 // pred_check
    _
  $region3: #{gcn_forward.1} parent=0 // pred_check_branch
    %12 = sbr.rel (0) target = $region5
  $region4: #{gcn_forward.1} parent=0 // pred_region
    _
  $region5: #{gcn_forward.1} parent=0 // pred_fallthru
    _
  // Predicated region
  $region6: #{gcn_forward.1} parent=0 // pred_check
    _
  $region7: #{gcn_forward.1} parent=0 // pred_check_branch
    %14 = sbr.rel (0) target = $region9
  $region8: #{gcn_forward.1} parent=0 // pred_region
    _
  $region9: #{gcn_forward.1} parent=0 // pred_fallthru
    _
  // Predicated region
  $region10: #{gcn_forward.1} parent=0 // pred_check
    _
  $region11: #{gcn_forward.1} parent=0 // pred_check_branch
    %16 = sbr.rel (0) target = $region13
  $region12: #{gcn_forward.1} parent=0 // pred_region
    _
  $region13: #{gcn_forward.1} parent=0 // pred_fallthru
    _
  // Predicated region
  $region14: #{gcn_forward.1} parent=0 // pred_check
    _
  $region15: #{gcn_forward.1} parent=0 // pred_check_branch
    %18 = sbr.rel (0) target = $region17
  $region16: #{gcn_forward.1} parent=0 // pred_region
    _
  $region17: #{gcn_forward.1} parent=0 // pred_fallthru
    _
  // Predicated region
  $region18: #{gcn_forward.1} parent=0 // pred_check
    _
  $region19: #{gcn_forward.1} parent=0 // pred_check_branch
    %20 = sbr.rel (0) target = $region21
  $region20: #{gcn_forward.1} parent=0 // pred_region
    _
  $region21: #{gcn_forward.1} parent=0 // pred_fallthru
    _
  // Predicated region
  $region22: #{gcn_forward.1} parent=0 // pred_check
    _
  $region23: #{gcn_forward.1} parent=0 // pred_check_branch
    %22 = sbr.rel (0) target = $region25
  $region24: #{gcn_forward.1} parent=0 // pred_region
    _
  $region25: #{gcn_forward.1} parent=0 // pred_fallthru
    _
  %v23 = vld [vmem:[%s0] sm:$0xff]
  %v24 = vld [vmem:[%s0 + $0x8] sm:$0xff]
  %v25 = vld [vmem:[%s1] sm:$0xff]
  %v26 = vld [vmem:[%s1 + $0x8] sm:$0xff]
  %vm27 = vcmask 130048
  %v29 = vsel %vm27, %v23, 0
  %v32 = vsel %vm27, %v24, 0
  %34 = vmatprep.subr.mxu0 0.0
  %35 = vmatpush1.msra.mxu0 0.0
  %36 = vmatprep.subr.mxu0 0.0
  %37 = vmatpush1.msra.mxu0 0.0
  %38 = vmatprep.subr.mxu0 0.0
  %39 = vmatpush1.msra.mxu0 0.0
  %40 = vmatprep.subr.mxu0 0.0
  %41 = vmatpush1.msra.mxu0 0.0
  %42 = vmatprep.subr.mxu0 0.0
  %43 = vmatpush1.msra.mxu0 0.0
  %44 = vmatprep.subr.mxu0 0.0
  %45 = vmatpush1.msra.mxu0 0.0
  %46 = vmatprep.subr.mxu0 0.0
  %47 = vmatpush1.msra.mxu0 0.0
  %48 = vmatprep.subr.mxu0 0.0
  %49 = vmatpush1.msra.mxu0 0.0
  %50 = vmatprep.subr.mxu0 0.0
  %51 = vmatpush1.msra.mxu0 0.0
  %52 = vmatprep.subr.mxu0 0.0
  %53 = vmatpush1.msra.mxu0 0.0
  %54 = vmatprep.subr.mxu0 0.0
  %55 = vmatpush1.msra.mxu0 0.0
  %56 = vmatprep.subr.mxu0 0.0
  %57 = vmatpush1.msra.mxu0 0.0
  %58 = vmatprep.subr.mxu0 0.0
  %59 = vmatpush1.msra.mxu0 0.0
  %60 = vmatprep.subr.mxu0 0.0
  %61 = vmatpush1.msra.mxu0 0.0
  %62 = vmatprep.subr.mxu0 0.0
  %63 = vmatpush1.msra.mxu0 %v26
  %64 = vmatprep.subr.mxu0 0.0
  %65 = vmatpush1.msra.mxu0 %v25
  %66 = vmatprep.subr.mxu0 0.0
  %67 = vmatpush2.msra.mxu0 0.0
  %68 = vmatprep.subr.mxu0 0.0
  %69 = vmatpush2.msra.mxu0 0.0
  %70 = vmatprep.subr.mxu0 0.0
  %71 = vmatpush2.msra.mxu0 0.0
  %72 = vmatprep.subr.mxu0 0.0
  %73 = vmatpush2.msra.mxu0 0.0
  %74 = vmatprep.subr.mxu0 0.0
  %75 = vmatpush2.msra.mxu0 0.0
  %76 = vmatprep.subr.mxu0 0.0
  %77 = vmatpush2.msra.mxu0 0.0
  %78 = vmatprep.subr.mxu0 0.0
  %79 = vmatpush2.msra.mxu0 0.0
  %80 = vmatprep.subr.mxu0 0.0
  %81 = vmatpush2.msra.mxu0 0.0
  %82 = vmatprep.subr.mxu0 0.0
  %83 = vmatpush2.msra.mxu0 0.0
  %84 = vmatprep.subr.mxu0 0.0
  %85 = vmatpush2.msra.mxu0 0.0
  %86 = vmatprep.subr.mxu0 0.0
  %87 = vmatpush2.msra.mxu0 0.0
  %88 = vmatprep.subr.mxu0 0.0
  %89 = vmatpush2.msra.mxu0 0.0
  %90 = vmatprep.subr.mxu0 0.0
  %91 = vmatpush2.msra.mxu0 0.0
  %92 = vmatprep.subr.mxu0 0.0
  %93 = vmatpush2.msra.mxu0 0.0
  %94 = vmatprep.subr.mxu0 0.0
  %95 = vmatpush2.msra.mxu0 0.0
  %96 = vmatprep.subr.mxu0 0.0
  %97 = vmatpush2.msra.mxu0 0.0
  %98 = vmatprep.mubr.f32.mxu0 0.0
  %99 = vmatmul.mubr.f32.gmra.mxu0 %v29
  %v100 = vpop.f32.mrf.mxu0
  %v101 = vadd.f32 0.0, %v100
  %v102 = vpop.f32.mrf.mxu0
  %103 = vmatprep.mubr.f32.mxu0 0.0
  %104 = vmatmul.mubr.f32.gmra.mxu0 %v32
  %v105 = vpop.f32.mrf.mxu0
  %v106 = vadd.f32 0.0, %v105
  %v107 = vpop.f32.mrf.mxu0
  %108 = vdwg.mxu0
  %v109 = vld [vmem:[%s2] sm:$0xff]
  %v110 = vld [vmem:[%s3] sm:$0x1]
  %v112 = vlaneseq
  %v113 = vshrl.u32 %v112, 7
  %v114 = vsub.s32 0, %v113
  %v115 = vrot.slane %v110, %v114
  %vm117 = vcmask 64512
  %v119 = vsel %vm117, %v101, 0
  %v122 = vsel %vm117, %v106, 0
  %124 = vmatprep.subr.mxu0 0.0
  %125 = vmatpush1.msra.mxu0 0.0
  %126 = vmatprep.subr.mxu0 0.0
  %127 = vmatpush1.msra.mxu0 0.0
  %128 = vmatprep.subr.mxu0 0.0
  %129 = vmatpush1.msra.mxu0 0.0
  %130 = vmatprep.subr.mxu0 0.0
  %131 = vmatpush1.msra.mxu0 0.0
  %132 = vmatprep.subr.mxu0 0.0
  %133 = vmatpush1.msra.mxu0 0.0
  %134 = vmatprep.subr.mxu0 0.0
  %135 = vmatpush1.msra.mxu0 0.0
  %136 = vmatprep.subr.mxu0 0.0
  %137 = vmatpush1.msra.mxu0 0.0
  %138 = vmatprep.subr.mxu0 0.0
  %139 = vmatpush1.msra.mxu0 0.0
  %140 = vmatprep.subr.mxu0 0.0
  %141 = vmatpush1.msra.mxu0 0.0
  %142 = vmatprep.subr.mxu0 0.0
  %143 = vmatpush1.msra.mxu0 0.0
  %144 = vmatprep.subr.mxu0 0.0
  %145 = vmatpush1.msra.mxu0 0.0
  %146 = vmatprep.subr.mxu0 0.0
  %147 = vmatpush1.msra.mxu0 0.0
  %148 = vmatprep.subr.mxu0 0.0
  %149 = vmatpush1.msra.mxu0 0.0
  %150 = vmatprep.subr.mxu0 0.0
  %151 = vmatpush1.msra.mxu0 0.0
  %152 = vmatprep.subr.mxu0 0.0
  %153 = vmatpush1.msra.mxu0 0.0
  %154 = vmatprep.subr.mxu0 0.0
  %155 = vmatpush1.msra.mxu0 %v109
  %156 = vmatprep.subr.mxu0 0.0
  %157 = vmatpush2.msra.mxu0 0.0
  %158 = vmatprep.subr.mxu0 0.0
  %159 = vmatpush2.msra.mxu0 0.0
  %160 = vmatprep.subr.mxu0 0.0
  %161 = vmatpush2.msra.mxu0 0.0
  %162 = vmatprep.subr.mxu0 0.0
  %163 = vmatpush2.msra.mxu0 0.0
  %164 = vmatprep.subr.mxu0 0.0
  %165 = vmatpush2.msra.mxu0 0.0
  %166 = vmatprep.subr.mxu0 0.0
  %167 = vmatpush2.msra.mxu0 0.0
  %168 = vmatprep.subr.mxu0 0.0
  %169 = vmatpush2.msra.mxu0 0.0
  %170 = vmatprep.subr.mxu0 0.0
  %171 = vmatpush2.msra.mxu0 0.0
  %172 = vmatprep.subr.mxu0 0.0
  %173 = vmatpush2.msra.mxu0 0.0
  %174 = vmatprep.subr.mxu0 0.0
  %175 = vmatpush2.msra.mxu0 0.0
  %176 = vmatprep.subr.mxu0 0.0
  %177 = vmatpush2.msra.mxu0 0.0
  %178 = vmatprep.subr.mxu0 0.0
  %179 = vmatpush2.msra.mxu0 0.0
  %180 = vmatprep.subr.mxu0 0.0
  %181 = vmatpush2.msra.mxu0 0.0
  %182 = vmatprep.subr.mxu0 0.0
  %183 = vmatpush2.msra.mxu0 0.0
  %184 = vmatprep.subr.mxu0 0.0
  %185 = vmatpush2.msra.mxu0 0.0
  %186 = vmatprep.subr.mxu0 0.0
  %187 = vmatpush2.msra.mxu0 0.0
  %188 = vmatprep.mubr.f32.mxu0 0.0
  %189 = vmatmul.mubr.f32.gmra.mxu0 %v119
  %v190 = vpop.f32.mrf.mxu0
  %v191 = vadd.f32 %v115, %v190
  %v192 = vpop.f32.mrf.mxu0
  %193 = vmatprep.mubr.f32.mxu0 0.0
  %194 = vmatmul.mubr.f32.gmra.mxu0 %v122
  %v195 = vpop.f32.mrf.mxu0
  %v196 = vadd.f32 %v115, %v195
  %v197 = vpop.f32.mrf.mxu0
  %198 = vdwg.mxu0
  %v199 = vmax.f32 %v191, 0.0
  %v200 = vmax.f32 %v196, 0.0
  %v201 = vld [vmem:[%s4] sm:$0xff]
  %v202 = vld [vmem:[%s4 + $0x8] sm:$0xff]
  %v203 = vld [vmem:[%s4 + $0x10] sm:$0xff]
  %v204 = vld [vmem:[%s4 + $0x18] sm:$0xff]
  %vm205 = vcmask 261120
  %v207 = vsel %vm205, %v199, 0
  %v210 = vsel %vm205, %v200, 0
  %212 = vmatprep.subr.mxu0 0.0
  %213 = vmatpush1.msra.mxu0 0.0
  %214 = vmatprep.subr.mxu0 0.0
  %215 = vmatpush1.msra.mxu0 0.0
  %216 = vmatprep.subr.mxu0 0.0
  %217 = vmatpush1.msra.mxu0 0.0
  %218 = vmatprep.subr.mxu0 0.0
  %219 = vmatpush1.msra.mxu0 0.0
  %220 = vmatprep.subr.mxu0 0.0
  %221 = vmatpush1.msra.mxu0 0.0
  %222 = vmatprep.subr.mxu0 0.0
  %223 = vmatpush1.msra.mxu0 0.0
  %224 = vmatprep.subr.mxu0 0.0
  %225 = vmatpush1.msra.mxu0 0.0
  %226 = vmatprep.subr.mxu0 0.0
  %227 = vmatpush1.msra.mxu0 0.0
  %228 = vmatprep.subr.mxu0 0.0
  %229 = vmatpush1.msra.mxu0 0.0
  %230 = vmatprep.subr.mxu0 0.0
  %231 = vmatpush1.msra.mxu0 0.0
  %232 = vmatprep.subr.mxu0 0.0
  %233 = vmatpush1.msra.mxu0 0.0
  %234 = vmatprep.subr.mxu0 0.0
  %235 = vmatpush1.msra.mxu0 0.0
  %236 = vmatprep.subr.mxu0 0.0
  %237 = vmatpush1.msra.mxu0 %v204
  %238 = vmatprep.subr.mxu0 0.0
  %239 = vmatpush1.msra.mxu0 %v203
  %240 = vmatprep.subr.mxu0 0.0
  %241 = vmatpush1.msra.mxu0 %v202
  %242 = vmatprep.subr.mxu0 0.0
  %243 = vmatpush1.msra.mxu0 %v201
  %244 = vmatprep.subr.mxu0 0.0
  %245 = vmatpush2.msra.mxu0 0.0
  %246 = vmatprep.subr.mxu0 0.0
  %247 = vmatpush2.msra.mxu0 0.0
  %248 = vmatprep.subr.mxu0 0.0
  %249 = vmatpush2.msra.mxu0 0.0
  %250 = vmatprep.subr.mxu0 0.0
  %251 = vmatpush2.msra.mxu0 0.0
  %252 = vmatprep.subr.mxu0 0.0
  %253 = vmatpush2.msra.mxu0 0.0
  %254 = vmatprep.subr.mxu0 0.0
  %255 = vmatpush2.msra.mxu0 0.0
  %256 = vmatprep.subr.mxu0 0.0
  %257 = vmatpush2.msra.mxu0 0.0
  %258 = vmatprep.subr.mxu0 0.0
  %259 = vmatpush2.msra.mxu0 0.0
  %260 = vmatprep.subr.mxu0 0.0
  %261 = vmatpush2.msra.mxu0 0.0
  %262 = vmatprep.subr.mxu0 0.0
  %263 = vmatpush2.msra.mxu0 0.0
  %264 = vmatprep.subr.mxu0 0.0
  %265 = vmatpush2.msra.mxu0 0.0
  %266 = vmatprep.subr.mxu0 0.0
  %267 = vmatpush2.msra.mxu0 0.0
  %268 = vmatprep.subr.mxu0 0.0
  %269 = vmatpush2.msra.mxu0 0.0
  %270 = vmatprep.subr.mxu0 0.0
  %271 = vmatpush2.msra.mxu0 0.0
  %272 = vmatprep.subr.mxu0 0.0
  %273 = vmatpush2.msra.mxu0 0.0
  %274 = vmatprep.subr.mxu0 0.0
  %275 = vmatpush2.msra.mxu0 0.0
  %276 = vmatprep.mubr.f32.mxu0 0.0
  %277 = vmatmul.mubr.f32.gmra.mxu0 %v207
  %v278 = vpop.f32.mrf.mxu0
  %v279 = vadd.f32 0.0, %v278
  %v280 = vpop.f32.mrf.mxu0
  %281 = vmatprep.mubr.f32.mxu0 0.0
  %282 = vmatmul.mubr.f32.gmra.mxu0 %v210
  %v283 = vpop.f32.mrf.mxu0
  %v284 = vadd.f32 0.0, %v283
  %v285 = vpop.f32.mrf.mxu0
  %286 = vdwg.mxu0
  %v287 = vld [vmem:[%s5] sm:$0x1]
  %v289 = vlaneseq
  %v290 = vshrl.u32 %v289, 7
  %v291 = vsub.s32 0, %v290
  %v292 = vrot.slane %v287, %v291
  %294 = vmatprep.subr.mxu0 0.0
  %295 = vmatpush1.msra.mxu0 0.0
  %296 = vmatprep.subr.mxu0 0.0
  %297 = vmatpush1.msra.mxu0 0.0
  %298 = vmatprep.subr.mxu0 0.0
  %299 = vmatpush1.msra.mxu0 0.0
  %300 = vmatprep.subr.mxu0 0.0
  %301 = vmatpush1.msra.mxu0 0.0
  %302 = vmatprep.subr.mxu0 0.0
  %303 = vmatpush1.msra.mxu0 0.0
  %304 = vmatprep.subr.mxu0 0.0
  %305 = vmatpush1.msra.mxu0 0.0
  %306 = vmatprep.subr.mxu0 0.0
  %307 = vmatpush1.msra.mxu0 0.0
  %308 = vmatprep.subr.mxu0 0.0
  %309 = vmatpush1.msra.mxu0 0.0
  %310 = vmatprep.subr.mxu0 0.0
  %311 = vmatpush1.msra.mxu0 0.0
  %312 = vmatprep.subr.mxu0 0.0
  %313 = vmatpush1.msra.mxu0 0.0
  %314 = vmatprep.subr.mxu0 0.0
  %315 = vmatpush1.msra.mxu0 0.0
  %316 = vmatprep.subr.mxu0 0.0
  %317 = vmatpush1.msra.mxu0 0.0
  %318 = vmatprep.subr.mxu0 0.0
  %319 = vmatpush1.msra.mxu0 0.0
  %320 = vmatprep.subr.mxu0 0.0
  %321 = vmatpush1.msra.mxu0 0.0
  %322 = vmatprep.subr.mxu0 0.0
  %323 = vmatpush1.msra.mxu0 %v284
  %324 = vmatprep.subr.mxu0 0.0
  %325 = vmatpush1.msra.mxu0 %v279
  %326 = vmatprep.subr.mxu0 0.0
  %327 = vmatpush2.msra.mxu0 0.0
  %328 = vmatprep.subr.mxu0 0.0
  %329 = vmatpush2.msra.mxu0 0.0
  %330 = vmatprep.subr.mxu0 0.0
  %331 = vmatpush2.msra.mxu0 0.0
  %332 = vmatprep.subr.mxu0 0.0
  %333 = vmatpush2.msra.mxu0 0.0
  %334 = vmatprep.subr.mxu0 0.0
  %335 = vmatpush2.msra.mxu0 0.0
  %336 = vmatprep.subr.mxu0 0.0
  %337 = vmatpush2.msra.mxu0 0.0
  %338 = vmatprep.subr.mxu0 0.0
  %339 = vmatpush2.msra.mxu0 0.0
  %340 = vmatprep.subr.mxu0 0.0
  %341 = vmatpush2.msra.mxu0 0.0
  %342 = vmatprep.subr.mxu0 0.0
  %343 = vmatpush2.msra.mxu0 0.0
  %344 = vmatprep.subr.mxu0 0.0
  %345 = vmatpush2.msra.mxu0 0.0
  %346 = vmatprep.subr.mxu0 0.0
  %347 = vmatpush2.msra.mxu0 0.0
  %348 = vmatprep.subr.mxu0 0.0
  %349 = vmatpush2.msra.mxu0 0.0
  %350 = vmatprep.subr.mxu0 0.0
  %351 = vmatpush2.msra.mxu0 0.0
  %352 = vmatprep.subr.mxu0 0.0
  %353 = vmatpush2.msra.mxu0 0.0
  %354 = vmatprep.subr.mxu0 0.0
  %355 = vmatpush2.msra.mxu0 0.0
  %356 = vmatprep.subr.mxu0 0.0
  %357 = vmatpush2.msra.mxu0 0.0
  %358 = vmatprep.mubr.f32.mxu0 0.0
  %359 = vmatmul.mubr.f32.gmra.mxu0 %v29
  %v360 = vpop.f32.mrf.mxu0
  %v361 = vadd.f32 %v292, %v360
  %v362 = vpop.f32.mrf.mxu0
  %363 = vmatprep.mubr.f32.mxu0 0.0
  %364 = vmatmul.mubr.f32.gmra.mxu0 %v32
  %v365 = vpop.f32.mrf.mxu0
  %v366 = vadd.f32 %v292, %v365
  %v367 = vpop.f32.mrf.mxu0
  %368 = vdwg.mxu0
  %369 = vst [vmem:[%s6] sm:$0xff] %v361
  %370 = vst [vmem:[%s6 + $0x8] sm:$0xff] %v366
  // Predicated region
  $region26: #{gcn_forward.1} parent=0 // pred_check
    _
  $region27: #{gcn_forward.1} parent=0 // pred_check_branch
    %372 = sbr.rel (0) target = $region29
  $region28: #{gcn_forward.1} parent=0 // pred_region
    _
  $region29: #{gcn_forward.1} parent=0 // pred_fallthru
    _
  // Predicated region
  $region30: #{gcn_forward.1} parent=0 // pred_check
    _
  $region31: #{gcn_forward.1} parent=0 // pred_check_branch
    %374 = sbr.rel (0) target = $region33
  $region32: #{gcn_forward.1} parent=0 // pred_region
    _
  $region33: #{gcn_forward.1} parent=0 // pred_fallthru
    _

</llo_original>
